<compile_context>
chip_gen: v5e
topology: v5e:2x2
jax: 0.10.0
libtpu: 0.0.40
codegen_flags: <defaults>
</compile_context>

<pallas_src>
import functools

import jax
import jax.numpy as jnp
from jax.experimental import pallas as pl
from jax.experimental.pallas import tpu as pltpu


_MASK_FILL = -10000000000.0  # matches torch masked_fill(mask, -1e10)


def _vmem_budgets():
    """(vmem_limit_bytes, per-grid-step working-set budget) per TPU generation."""
    cap = 64 << 20  # conservative default: v7x per-TensorCore VMEM
    try:
        cap = int(pltpu.get_tpu_info().vmem_capacity_bytes)
    except Exception:
        pass
    if cap >= (100 << 20):          # v5e / v6e: 128 MiB physical VMEM
        return 96 << 20, 24 << 20
    return 44 << 20, 7 << 20        # v7x: 64 MiB per TensorCore


def _attn_exact_kernel(*refs, temperature, has_mask, use_bf16):
    """One (batch-chunk, q-tile) block: full-Lk exact softmax, emits attn probs."""
    if has_mask:
        q_ref, k_ref, v_ref, mask_ref, out_ref, attn_ref = refs
    else:
        q_ref, k_ref, v_ref, out_ref, attn_ref = refs
        mask_ref = None

    # Fold 1/temperature into q (Lq*D mults) instead of dividing Lq*Lk scores.
    q = q_ref[...] * jnp.asarray(1.0 / temperature, dtype=q_ref.dtype)
    k = k_ref[...]
    if use_bf16 and q.dtype == jnp.float32:
        # bf16 MXU operands (full MXU rate on v5e/v6e/v7x), f32 accumulation.
        q = q.astype(jnp.bfloat16)
        k = k.astype(jnp.bfloat16)

    # Batched matmul contracting on D for both operands: MXU consumes K in its
    # native [Lk, D] layout (no XLU transpose), f32 accumulation.
    s = jnp.einsum("bqd,bkd->bqk", q, k, preferred_element_type=jnp.float32)
    if has_mask:
        s = jnp.where(mask_ref[...] != 0, jnp.float32(_MASK_FILL), s)

    # Softmax over the key axis, all in f32 (v5e has no bf16 VPU/EUP).
    s = s - jnp.max(s, axis=-1, keepdims=True)
    p = jnp.exp(s)
    # Exact reciprocal: attn probabilities are a user-visible output here.
    p = p * pl.reciprocal(jnp.sum(p, axis=-1, keepdims=True), approx=False)

    # TODO(synk): dropout is identity in eval mode; training-mode stochastic
    # dropout (pltpu.prng_seed + pltpu.prng_random_bits) intentionally omitted.
    attn_ref[...] = p.astype(attn_ref.dtype)

    v = v_ref[...]
    pv_dtype = jnp.bfloat16 if (use_bf16 and v.dtype == jnp.float32) else v.dtype
    out_ref[...] = jnp.einsum(
        "bqk,bkd->bqd", p.astype(pv_dtype), v.astype(pv_dtype),
        preferred_element_type=jnp.float32).astype(out_ref.dtype)


def _attn_flash_kernel(*refs, temperature, has_mask, use_bf16):
    """Flash-style kernel: tiles Lk with an online-softmax accumulator, no attn out."""
    if has_mask:
        q_ref, k_ref, v_ref, mask_ref, out_ref, q_sc, m_sc, l_sc, acc_sc = refs
    else:
        q_ref, k_ref, v_ref, out_ref, q_sc, m_sc, l_sc, acc_sc = refs
        mask_ref = None

    kv = pl.program_id(2)

    @pl.when(kv == 0)
    def _init():
        # Hoist the 1/temperature scale out of the kv loop: the q tile is
        # constant across the (innermost) kv axis, so scale it once.
        q_sc[...] = q_ref[...] * jnp.asarray(1.0 / temperature, dtype=q_ref.dtype)
        # m/l are lane-replicated (width 128) so per-step bookkeeping stays VPU.
        m_sc[...] = jnp.full_like(m_sc, -jnp.inf)
        l_sc[...] = jnp.zeros_like(l_sc)
        acc_sc[...] = jnp.zeros_like(acc_sc)

    q = q_sc[...]
    k = k_ref[...]
    if use_bf16 and q.dtype == jnp.float32:
        q = q.astype(jnp.bfloat16)
        k = k.astype(jnp.bfloat16)
    s = jnp.einsum("bqd,bkd->bqk", q, k, preferred_element_type=jnp.float32)
    if has_mask:
        s = jnp.where(mask_ref[...] != 0, jnp.float32(_MASK_FILL), s)

    m_prev = m_sc[...]                                        # (bb, tq, 128)
    m_new = jnp.maximum(m_prev, jnp.max(s, axis=-1, keepdims=True))
    alpha = jnp.exp(m_prev - m_new)                           # lane-replicated
    p = jnp.exp(s - m_new[..., :1])
    l_sc[...] = alpha * l_sc[...] + jnp.sum(p, axis=-1, keepdims=True)

    v = v_ref[...]
    pv_dtype = jnp.bfloat16 if (use_bf16 and v.dtype == jnp.float32) else v.dtype
    acc_sc[...] = alpha[..., :1] * acc_sc[...] + jnp.einsum(
        "bqk,bkd->bqd", p.astype(pv_dtype), v.astype(pv_dtype),
        preferred_element_type=jnp.float32)
    m_sc[...] = m_new

    @pl.when(kv == pl.num_programs(2) - 1)
    def _finalize():
        # approx=True -> EUP vrcp slot (otherwise idle); ~1e-4 relative error.
        out_ref[...] = (acc_sc[...] *
                        pl.reciprocal(l_sc[..., :1], approx=True)).astype(out_ref.dtype)


def _pick_block(n, preferred):
    """Largest tile in `preferred` that divides n; else the largest multiple-of-8
    divisor of n below max(preferred); else the full dimension."""
    for c in preferred:
        if c <= n and n % c == 0:
            return c
    cap = min(n, max(preferred))
    start = (cap // 8) * 8
    for c in range(start, 0, -8):
        if n % c == 0:
            return c
    return n


def _pick_batch_chunk(batch, per_item_bytes, budget, max_chunk=None):
    """Largest divisor of `batch` whose working set fits `budget` (and <= max_chunk)."""
    cap = max(1, budget // max(per_item_bytes, 1))
    if max_chunk is not None:
        cap = min(cap, max(1, max_chunk))
    best = 1
    for c in range(1, batch + 1):
        if batch % c == 0 and c <= cap:
            best = c
    return best


def scaled_dot_product_attention(q, k, v, mask=None, *, temperature,
                                 return_attn=True, use_bf16_matmul=False):
    """q: [B, Lq, D], k/v: [B, Lk, D], mask: [B, Lq, Lk] (True == masked) or None.

    Returns (output, attn).  attn is None when return_attn=False, which enables
    the flash/online-softmax path and skips the quadratic attn writeback.
    use_bf16_matmul casts f32 MXU operands to bf16 (f32 accumulation kept).
    """
    B, Lq, D = q.shape
    _, Lk, _ = k.shape
    has_mask = mask is not None
    temperature = float(temperature)
    itemsize = jnp.dtype(q.dtype).itemsize
    vmem_limit, block_budget = _vmem_budgets()

    mask_i8 = mask.astype(jnp.int8) if has_mask else None

    # Query tile: full Lq when small; otherwise >=128 (no MXU-underfilling tiny tiles).
    tq = Lq if Lq <= 256 else _pick_block(Lq, (256, 128))

    if return_attn:
        # Per-item (bb == 1) working set, counting Pallas double-buffering (x2 per
        # pipelined operand/output) plus f32 score/prob intermediates.
        per_item = ((2 * tq * D          # q
                     + 2 * Lk * D        # k
                     + 2 * Lk * D        # v
                     + 2 * tq * D        # out
                     + 2 * tq * Lk)      # attn out
                    * itemsize
                    + (2 * tq * Lk if has_mask else 0)   # int8 mask
                    + 2 * tq * Lk * 4)                   # f32 scores + probs
        # Keep >= 2 parallel grid points so both v7x TensorCores have work.
        max_bb = B if (Lq // tq) >= 2 else max(1, B // 2)
        bb = _pick_batch_chunk(B, per_item, block_budget, max_bb)
        grid = (B // bb, Lq // tq)

        in_specs = [
            pl.BlockSpec((bb, tq, D), lambda b, i: (b, i, 0)),   # q
            pl.BlockSpec((bb, Lk, D), lambda b, i: (b, 0, 0)),   # k
            pl.BlockSpec((bb, Lk, D), lambda b, i: (b, 0, 0)),   # v
        ]
        inputs = [q, k, v]
        if has_mask:
            in_specs.append(pl.BlockSpec((bb, tq, Lk), lambda b, i: (b, i, 0)))
            inputs.append(mask_i8)

        kernel = functools.partial(_attn_exact_kernel, temperature=temperature,
                                   has_mask=has_mask, use_bf16=use_bf16_matmul)
        out, attn = pl.pallas_call(
            kernel,
            grid_spec=pltpu.PrefetchScalarGridSpec(
                num_scalar_prefetch=0,
                grid=grid,
                in_specs=in_specs,
                out_specs=[
                    pl.BlockSpec((bb, tq, D), lambda b, i: (b, i, 0)),
                    pl.BlockSpec((bb, tq, Lk), lambda b, i: (b, i, 0)),
                ],
            ),
            out_shape=(
                jax.ShapeDtypeStruct((B, Lq, D), q.dtype),
                jax.ShapeDtypeStruct((B, Lq, Lk), q.dtype),
            ),
            compiler_params=pltpu.CompilerParams(
                dimension_semantics=("parallel", "parallel"),
                vmem_limit_bytes=vmem_limit,
            ),
        )(*inputs)
        return out, attn

    # ---------- flash / online-softmax path (no attn-matrix writeback) ----------
    tk = Lk if Lk <= 512 else _pick_block(Lk, (512, 256, 128))
    per_item = ((2 * tq * D + 2 * tk * D + 2 * tk * D + 2 * tq * D) * itemsize
                + (2 * tq * tk if has_mask else 0)   # int8 mask
                + 2 * tq * tk * 4                    # f32 s + p intermediates
                + tq * D * 4                         # acc scratch (f32)
                + 2 * tq * 128 * 4                   # m/l scratch (f32, 128-wide)
                + tq * D * itemsize)                 # scaled-q scratch
    max_bb = B if (Lq // tq) >= 2 else max(1, B // 2)
    bb = _pick_batch_chunk(B, per_item, block_budget, max_bb)
    grid = (B // bb, Lq // tq, Lk // tk)

    in_specs = [
        pl.BlockSpec((bb, tq, D), lambda b, i, j: (b, i, 0)),    # q
        pl.BlockSpec((bb, tk, D), lambda b, i, j: (b, j, 0)),    # k
        pl.BlockSpec((bb, tk, D), lambda b, i, j: (b, j, 0)),    # v
    ]
    inputs = [q, k, v]
    if has_mask:
        in_specs.append(pl.BlockSpec((bb, tq, tk), lambda b, i, j: (b, i, j)))
        inputs.append(mask_i8)

    kernel = functools.partial(_attn_flash_kernel, temperature=temperature,
                               has_mask=has_mask, use_bf16=use_bf16_matmul)
    out = pl.pallas_call(
        kernel,
        grid_spec=pltpu.PrefetchScalarGridSpec(
            num_scalar_prefetch=0,
            grid=grid,
            in_specs=in_specs,
            out_specs=pl.BlockSpec((bb, tq, D), lambda b, i, j: (b, i, 0)),
            scratch_shapes=[
                pltpu.VMEM((bb, tq, D), q.dtype),       # pre-scaled q
                pltpu.VMEM((bb, tq, 128), jnp.float32),  # running max (lane-replicated)
                pltpu.VMEM((bb, tq, 128), jnp.float32),  # running denom (lane-replicated)
                pltpu.VMEM((bb, tq, D), jnp.float32),    # output accumulator
            ],
        ),
        out_shape=jax.ShapeDtypeStruct((B, Lq, D), q.dtype),
        compiler_params=pltpu.CompilerParams(
            dimension_semantics=("parallel", "parallel", "arbitrary"),
            vmem_limit_bytes=vmem_limit,
        ),
    )(*inputs)
    return out, None


if __name__ == "__main__":
    # Small shapes consistent with the module: n*b = 8, l_q = l_k = 8, d = 32.
    B, Lq, Lk, D = 8, 8, 8, 32
    temperature = float(D) ** 0.5

    key = jax.random.PRNGKey(0)
    kq, kk, kv_, km = jax.random.split(key, 4)
    q = jax.random.normal(kq, (B, Lq, D), dtype=jnp.float32)
    k = jax.random.normal(kk, (B, Lk, D), dtype=jnp.float32)
    v = jax.random.normal(kv_, (B, Lk, D), dtype=jnp.float32)
    mask = jax.random.bernoulli(km, 0.2, (B, Lq, Lk))  # True == masked out

    out, attn = scaled_dot_product_attention(q, k, v, mask, temperature=temperature)
    out_nm, attn_nm = scaled_dot_product_attention(q, k, v, None, temperature=temperature)
    out_flash, _ = scaled_dot_product_attention(q, k, v, mask, temperature=temperature,
                                                return_attn=False)
    out_bf16, _ = scaled_dot_product_attention(q, k, v, mask, temperature=temperature,
                                               return_attn=False, use_bf16_matmul=True)
    jax.block_until_ready((out, attn, out_nm, attn_nm, out_flash, out_bf16))

    # Reference in plain JAX (mirrors the torch forward, eval-mode dropout).
    hi = jax.lax.Precision.HIGHEST
    scores = jnp.einsum("bqd,bkd->bqk", q, k, precision=hi) / temperature
    scores_m = jnp.where(mask, _MASK_FILL, scores)
    attn_ref = jax.nn.softmax(scores_m, axis=2)
    out_ref = jnp.einsum("bqk,bkd->bqd", attn_ref, v, precision=hi)
    attn_ref_nm = jax.nn.softmax(scores, axis=2)
    out_ref_nm = jnp.einsum("bqk,bkd->bqd", attn_ref_nm, v, precision=hi)

    assert jnp.allclose(attn, attn_ref, atol=1e-4, rtol=1e-4)
    assert jnp.allclose(out, out_ref, atol=1e-4, rtol=1e-4)
    assert jnp.allclose(attn_nm, attn_ref_nm, atol=1e-4, rtol=1e-4)
    assert jnp.allclose(out_nm, out_ref_nm, atol=1e-4, rtol=1e-4)
    # Flash path uses approx reciprocal (~1e-4 relative) -> looser tolerance.
    assert jnp.allclose(out_flash, out_ref, atol=2e-3, rtol=2e-3)
    # bf16 MXU-operand path: f32 accumulation, bf16 rounding on operands.
    assert jnp.allclose(out_bf16, out_ref, atol=1e-1, rtol=1e-1)

    print("KERNEL_OK")
</pallas_src>

<mosaic_0001>
module attributes {stable_mosaic.version = 11 : i64} {
  func.func @_attn_exact_kernel(%arg0: i32, %arg1: i32, %arg2: memref<4x8x32xf32, #tpu.memory_space<vmem>>, %arg3: memref<4x8x32xf32, #tpu.memory_space<vmem>>, %arg4: memref<4x8x32xf32, #tpu.memory_space<vmem>>, %arg5: memref<4x8x8xi8, #tpu.memory_space<vmem>>, %arg6: memref<4x8x32xf32, #tpu.memory_space<vmem>>, %arg7: memref<4x8x8xf32, #tpu.memory_space<vmem>>) attributes {dimension_semantics = [#tpu.dimension_semantics<parallel>, #tpu.dimension_semantics<parallel>], iteration_bounds = array<i64: 2, 1>, scalar_prefetch = 0 : i64, scratch_operands = 0 : i64, tpu.core_type = #tpu.core_type<tc>, window_params = [{transform_indices = @transform_0, window_bounds = array<i64: 4, 8, 32>}, {transform_indices = @transform_1, window_bounds = array<i64: 4, 8, 32>}, {transform_indices = @transform_2, window_bounds = array<i64: 4, 8, 32>}, {transform_indices = @transform_3, window_bounds = array<i64: 4, 8, 8>}, {transform_indices = @transform_4, window_bounds = array<i64: 4, 8, 32>}, {transform_indices = @transform_5, window_bounds = array<i64: 4, 8, 8>}]} {
    %c0 = arith.constant 0 : index
    %c0_0 = arith.constant 0 : index
    %c0_1 = arith.constant 0 : index
    %0 = vector.load %arg2[%c0, %c0_0, %c0_1] : memref<4x8x32xf32, #tpu.memory_space<vmem>>, vector<4x8x32xf32>
    %cst = arith.constant 0.176776692 : f32
    %1 = vector.broadcast %cst : f32 to vector<4x8x32xf32>
    %2 = arith.mulf %0, %1 : vector<4x8x32xf32>
    %c0_2 = arith.constant 0 : index
    %c0_3 = arith.constant 0 : index
    %c0_4 = arith.constant 0 : index
    %3 = vector.load %arg3[%c0_2, %c0_3, %c0_4] : memref<4x8x32xf32, #tpu.memory_space<vmem>>, vector<4x8x32xf32>
    "tpu.trace_start"() <{level = 10 : i32, message = "bqd,bkd->bqk"}> : () -> ()
    %cst_5 = arith.constant dense<0.000000e+00> : vector<4x8x8xf32>
    %4 = tpu.matmul %2, %3, %cst_5 {dimension_numbers = #tpu.dot_dimension_numbers<[2], [2], [1], [1], [0, 0, 0, 1, 1, 1], [0], [0]>} : vector<4x8x32xf32>, vector<4x8x32xf32>, vector<4x8x8xf32> -> vector<4x8x8xf32>
    "tpu.trace_stop"() : () -> ()
    %c0_6 = arith.constant 0 : index
    %c0_7 = arith.constant 0 : index
    %c0_8 = arith.constant 0 : index
    %5 = vector.load %arg5[%c0_6, %c0_7, %c0_8] : memref<4x8x8xi8, #tpu.memory_space<vmem>>, vector<4x8x8xi8>
    %c0_i8 = arith.constant 0 : i8
    %6 = vector.broadcast %c0_i8 : i8 to vector<4x8x8xi8>
    %7 = arith.cmpi ne, %5, %6 : vector<4x8x8xi8>
    %cst_9 = arith.constant -1.000000e+10 : f32
    %8 = vector.broadcast %cst_9 : f32 to vector<4x8x8xf32>
    %9 = arith.select %7, %8, %4 : vector<4x8x8xi1>, vector<4x8x8xf32>
    %cst_10 = arith.constant dense<0xFF800000> : vector<4x8xf32>
    %10 = vector.multi_reduction <maximumf>, %9, %cst_10 [2] : vector<4x8x8xf32> to vector<4x8xf32>
    %11 = vector.shape_cast %10 : vector<4x8xf32> to vector<4x8x1xf32>
    %12 = vector.broadcast %11 : vector<4x8x1xf32> to vector<4x8x8xf32>
    %13 = arith.subf %9, %12 : vector<4x8x8xf32>
    %14 = math.exp %13 : vector<4x8x8xf32>
    %cst_11 = arith.constant dense<0.000000e+00> : vector<4x8xf32>
    %15 = vector.multi_reduction <add>, %14, %cst_11 [2] : vector<4x8x8xf32> to vector<4x8xf32>
    %16 = vector.shape_cast %15 : vector<4x8xf32> to vector<4x8x1xf32>
    %17 = tpu.reciprocal %16 : vector<4x8x1xf32> -> vector<4x8x1xf32>
    %18 = vector.broadcast %17 : vector<4x8x1xf32> to vector<4x8x8xf32>
    %19 = arith.mulf %14, %18 : vector<4x8x8xf32>
    %c0_12 = arith.constant 0 : index
    %c0_13 = arith.constant 0 : index
    %c0_14 = arith.constant 0 : index
    %20 = vector.load %arg7[%c0_12, %c0_13, %c0_14] : memref<4x8x8xf32, #tpu.memory_space<vmem>>, vector<4x8x8xf32>
    tpu.vector_store %arg7[%c0_12, %c0_13, %c0_14], %19 {strides = array<i32>} : memref<4x8x8xf32, #tpu.memory_space<vmem>>, vector<4x8x8xf32>,
    %c0_15 = arith.constant 0 : index
    %c0_16 = arith.constant 0 : index
    %c0_17 = arith.constant 0 : index
    %21 = vector.load %arg4[%c0_15, %c0_16, %c0_17] : memref<4x8x32xf32, #tpu.memory_space<vmem>>, vector<4x8x32xf32>
    "tpu.trace_start"() <{level = 10 : i32, message = "bqk,bkd->bqd"}> : () -> ()
    %cst_18 = arith.constant dense<0.000000e+00> : vector<4x8x32xf32>
    %22 = tpu.matmul %19, %21, %cst_18 {dimension_numbers = #tpu.dot_dimension_numbers<[2], [1], [1], [2], [0, 0, 0, 1, 1, 2], [0], [0]>} : vector<4x8x8xf32>, vector<4x8x32xf32>, vector<4x8x32xf32> -> vector<4x8x32xf32>
    "tpu.trace_stop"() : () -> ()
    %c0_19 = arith.constant 0 : index
    %c0_20 = arith.constant 0 : index
    %c0_21 = arith.constant 0 : index
    %23 = vector.load %arg6[%c0_19, %c0_20, %c0_21] : memref<4x8x32xf32, #tpu.memory_space<vmem>>, vector<4x8x32xf32>
    tpu.vector_store %arg6[%c0_19, %c0_20, %c0_21], %22 {strides = array<i32>} : memref<4x8x32xf32, #tpu.memory_space<vmem>>, vector<4x8x32xf32>,
    return
  }
  func.func @transform_0(%arg0: i32, %arg1: i32) -> (i32, i32, i32) {
    %c0_i32 = arith.constant 0 : i32
    %c0_i32_0 = arith.constant 0 : i32
    return %arg0, %arg1, %c0_i32 : i32, i32, i32
  }
  func.func @transform_1(%arg0: i32, %arg1: i32) -> (i32, i32, i32) {
    %c0_i32 = arith.constant 0 : i32
    %c0_i32_0 = arith.constant 0 : i32
    %c0_i32_1 = arith.constant 0 : i32
    return %arg0, %c0_i32, %c0_i32_0 : i32, i32, i32
  }
  func.func @transform_2(%arg0: i32, %arg1: i32) -> (i32, i32, i32) {
    %c0_i32 = arith.constant 0 : i32
    %c0_i32_0 = arith.constant 0 : i32
    %c0_i32_1 = arith.constant 0 : i32
    return %arg0, %c0_i32, %c0_i32_0 : i32, i32, i32
  }
  func.func @transform_3(%arg0: i32, %arg1: i32) -> (i32, i32, i32) {
    %c0_i32 = arith.constant 0 : i32
    %c0_i32_0 = arith.constant 0 : i32
    return %arg0, %arg1, %c0_i32 : i32, i32, i32
  }
  func.func @transform_4(%arg0: i32, %arg1: i32) -> (i32, i32, i32) {
    %c0_i32 = arith.constant 0 : i32
    %c0_i32_0 = arith.constant 0 : i32
    return %arg0, %arg1, %c0_i32 : i32, i32, i32
  }
  func.func @transform_5(%arg0: i32, %arg1: i32) -> (i32, i32, i32) {
    %c0_i32 = arith.constant 0 : i32
    %c0_i32_0 = arith.constant 0 : i32
    return %arg0, %arg1, %c0_i32 : i32, i32, i32
  }
}

</mosaic_0001>

<llo_original>
// kernel: tpu_custom_call.1
$region0: #{tpu_custom_call.1}
  #allocation0 [shape = 'u32[]', space=smem, size = 0x4, offset = 0x4, fixed_abs, tag = 'smem constant byte address 0x4 - core index']
  #allocation1 [shape = 'u32[72,128]{1,0:T(1,128)}', space=vmem, size = 0x9000, scoped, tag = 'internal scratch']
  %s0 = inlined_call_operand.hbm [shape: f32[8,8,32], index: 0, kind: input, shape index: {}]
  %s1 = inlined_call_operand.hbm [shape: f32[8,8,32], index: 1, kind: input, shape index: {}]
  %s2 = inlined_call_operand.hbm [shape: f32[8,8,32], index: 2, kind: input, shape index: {}]
  %s3 = inlined_call_operand.hbm [shape: s8[8,8,8], index: 3, kind: input, shape index: {}]
  %s4 = inlined_call_operand.hbm [shape: f32[8,8,32], index: 4, kind: output, shape index: {0}]
  %s5 = inlined_call_operand.hbm [shape: f32[8,8,8], index: 5, kind: output, shape index: {1}]
  %6 = xla_tuple %s4, %s5
  %s7 = sld [smem:[#allocation0]]
  $region73: #{tpu_custom_call.1} parent=0
    _
  %s9 = ssub.s32 1, %s7
  %s10 = scalar_select 0, %s9, %s7
  $region1: #{tpu_custom_call.1} parent=0
    #allocation2 [shape = 'u8[32768]{0}', space=vmem, size = 0x8000, scoped, tag = 'input window, operand 0']
    #allocation3 [shape = 's32[2]{0}', space=sflag, size = 0x8, scoped, tag = 'scoped memory for tpu_custom_call.1']
    #allocation4 [shape = 's32[2]{0}', space=sflag, size = 0x8, scoped, tag = 'scoped memory for tpu_custom_call.1']
    #allocation5 [shape = 'u8[32768]{0}', space=vmem, size = 0x8000, scoped, tag = 'input window, operand 1']
    #allocation6 [shape = 's32[2]{0}', space=sflag, size = 0x8, scoped, tag = 'scoped memory for tpu_custom_call.1']
    #allocation7 [shape = 'u8[32768]{0}', space=vmem, size = 0x8000, scoped, tag = 'input window, operand 2']
    #allocation8 [shape = 'u8[8192]{0}', space=vmem, size = 0x2000, scoped, tag = 'input window, operand 3']
    #allocation9 [shape = 's32[2]{0}', space=sflag, size = 0x8, scoped, tag = 'scoped memory for tpu_custom_call.1']
    #allocation10 [shape = 'u8[32768]{0}', space=vmem, size = 0x8000, scoped, tag = 'output window, operand 0']
    #allocation11 [shape = 'u8[32768]{0}', space=vmem, size = 0x8000, scoped, tag = 'output window, operand 1']
    #allocation12 [shape = 's32[2]{0}', space=sflag, size = 0x8, scoped, tag = 'scoped memory for tpu_custom_call.1']
    %11 = vsyncpa [#allocation3], 0
    %s12 = scalar_lea.sflag [#allocation3], 1
    %13 = vsyncpa %s12, 0
    %14 = vsyncpa [#allocation6], 0
    %s15 = scalar_lea.sflag [#allocation6], 1
    %16 = vsyncpa %s15, 0
    %17 = vsyncpa [#allocation9], 0
    %s18 = scalar_lea.sflag [#allocation9], 1
    %19 = vsyncpa %s18, 0
    %20 = vsyncpa [#allocation4], 0
    %s21 = scalar_lea.sflag [#allocation4], 1
    %22 = vsyncpa %s21, 0
    %23 = vsyncpa [#allocation12], 0
    %s24 = scalar_lea.sflag [#allocation12], 1
    %25 = vsyncpa %s24, 0
    loop: start=0, step=1, limit=4
    $region2: #{tpu_custom_call.1} parent=1 // loop_pre_header
      _
    $region3: #{tpu_custom_call.1} parent=1 // loop_header
      %s27 = sphi 0, %s31
      %p28 = scmp.ge.s32.totalorder %s27, 4
      %s34 = sphi 0, %s46
      %s35 = sphi 0, %s42
      %s36 = sphi 0, %s34
      %s37 = sphi 0, %s35
      %s38 = sphi 0, %s36
      %s39 = sphi 0, %s37
      %s51 = sphi 0, %s53
      %s54 = sphi 0, %s51
      %s55 = sphi 0, %s54
      %s71 = sphi 0, %s55
      %s77 = sphi 0, %s79
      %s80 = sphi 0, %s77
      %s81 = sphi 0, %s80
      %s97 = sphi 0, %s81
      %s103 = sphi 0, %s105
      %s106 = sphi 0, %s103
      %s107 = sphi 0, %s106
      %s123 = sphi 0, %s107
      %s131 = sphi 0, %s133
      %s134 = sphi 0, %s131
      %s135 = sphi 0, %s134
      %s151 = sphi 0, %s135
      %s159 = sphi 0, %s161
      %s162 = sphi 0, %s159
      %s163 = sphi 0, %s162
      %s179 = sphi 0, %s163
      %s187 = sphi 0, %s189
      %s190 = sphi 0, %s187
      %s191 = sphi 0, %s190
      %s207 = sphi 0, %s191
    $region4: #{tpu_custom_call.1} parent=1 // loop_header_branch
      %30 = sbr.rel (%p28) target = $region8
    $region5: #{tpu_custom_call.1} parent=1 // loop_body
      %s32 = ssub.s32 %s27, 1
      %s33 = ssub.s32 %s27, 2
      %s40 = sadd.s32 1, %s35
      %p41 = scmp.ge.s32.totalorder %s40, 1
      %s42 = scalar_select %p41, 0, %s40
      %s43 = sadd.s32 1, %s34
      %s44 = scalar_select %p41, %s43, %s34
      %p45 = scmp.ge.s32.totalorder %s44, 2
      %s46 = scalar_select %p45, 0, %s44
      %s47 = ssub.s32 %s34, %s46
      %s48 = ssub.s32 %s35, %s42
      %s49 = sor.u32 %s47, %s48
      %p50 = scmp.eq.s32.totalorder %s49, 0
      %s52 = sadd.s32 %s51, 1
      %s53 = scalar_select %p50, %s51, %s52
      %p56 = pneg %p50
      %p57 = scmp.eq.s32.totalorder %s27, 1
      %p58 = por %p56, %p57
      %p59 = scmp.ne.s32.totalorder %s51, %s54
      %p60 = scmp.eq.s32.totalorder %s27, 0
      %p61 = por %p59, %p60
      %p62 = scmp.ne.s32.totalorder %s51, %s54
      %p63 = scmp.eq.s32.totalorder %s32, 1
      %p64 = por %p62, %p63
      %p65 = scmp.ne.s32.totalorder %s54, %s55
      %p66 = scmp.eq.s32.totalorder %s32, 0
      %p67 = por %p65, %p66
      %p68 = scmp.ne.s32.totalorder %s54, %s55
      %p69 = scmp.eq.s32.totalorder %s33, 1
      %p70 = por %p68, %p69
      %p72 = scmp.ne.s32.totalorder %s55, %s71
      %p73 = scmp.eq.s32.totalorder %s33, 0
      %p74 = por %p72, %p73
      %s75 = ssub.s32 %s34, %s46
      %p76 = scmp.eq.s32.totalorder %s75, 0
      %s78 = sadd.s32 %s77, 1
      %s79 = scalar_select %p76, %s77, %s78
      %p82 = pneg %p76
      %p83 = scmp.eq.s32.totalorder %s27, 1
      %p84 = por %p82, %p83
      %p85 = scmp.ne.s32.totalorder %s77, %s80
      %p86 = scmp.eq.s32.totalorder %s27, 0
      %p87 = por %p85, %p86
      %p88 = scmp.ne.s32.totalorder %s77, %s80
      %p89 = scmp.eq.s32.totalorder %s32, 1
      %p90 = por %p88, %p89
      %p91 = scmp.ne.s32.totalorder %s80, %s81
      %p92 = scmp.eq.s32.totalorder %s32, 0
      %p93 = por %p91, %p92
      %p94 = scmp.ne.s32.totalorder %s80, %s81
      %p95 = scmp.eq.s32.totalorder %s33, 1
      %p96 = por %p94, %p95
      %p98 = scmp.ne.s32.totalorder %s81, %s97
      %p99 = scmp.eq.s32.totalorder %s33, 0
      %p100 = por %p98, %p99
      %s101 = ssub.s32 %s34, %s46
      %p102 = scmp.eq.s32.totalorder %s101, 0
      %s104 = sadd.s32 %s103, 1
      %s105 = scalar_select %p102, %s103, %s104
      %p108 = pneg %p102
      %p109 = scmp.eq.s32.totalorder %s27, 1
      %p110 = por %p108, %p109
      %p111 = scmp.ne.s32.totalorder %s103, %s106
      %p112 = scmp.eq.s32.totalorder %s27, 0
      %p113 = por %p111, %p112
      %p114 = scmp.ne.s32.totalorder %s103, %s106
      %p115 = scmp.eq.s32.totalorder %s32, 1
      %p116 = por %p114, %p115
      %p117 = scmp.ne.s32.totalorder %s106, %s107
      %p118 = scmp.eq.s32.totalorder %s32, 0
      %p119 = por %p117, %p118
      %p120 = scmp.ne.s32.totalorder %s106, %s107
      %p121 = scmp.eq.s32.totalorder %s33, 1
      %p122 = por %p120, %p121
      %p124 = scmp.ne.s32.totalorder %s107, %s123
      %p125 = scmp.eq.s32.totalorder %s33, 0
      %p126 = por %p124, %p125
      %s127 = ssub.s32 %s34, %s46
      %s128 = ssub.s32 %s35, %s42
      %s129 = sor.u32 %s127, %s128
      %p130 = scmp.eq.s32.totalorder %s129, 0
      %s132 = sadd.s32 %s131, 1
      %s133 = scalar_select %p130, %s131, %s132
      %p136 = pneg %p130
      %p137 = scmp.eq.s32.totalorder %s27, 1
      %p138 = por %p136, %p137
      %p139 = scmp.ne.s32.totalorder %s131, %s134
      %p140 = scmp.eq.s32.totalorder %s27, 0
      %p141 = por %p139, %p140
      %p142 = scmp.ne.s32.totalorder %s131, %s134
      %p143 = scmp.eq.s32.totalorder %s32, 1
      %p144 = por %p142, %p143
      %p145 = scmp.ne.s32.totalorder %s134, %s135
      %p146 = scmp.eq.s32.totalorder %s32, 0
      %p147 = por %p145, %p146
      %p148 = scmp.ne.s32.totalorder %s134, %s135
      %p149 = scmp.eq.s32.totalorder %s33, 1
      %p150 = por %p148, %p149
      %p152 = scmp.ne.s32.totalorder %s135, %s151
      %p153 = scmp.eq.s32.totalorder %s33, 0
      %p154 = por %p152, %p153
      %s155 = ssub.s32 %s34, %s46
      %s156 = ssub.s32 %s35, %s42
      %s157 = sor.u32 %s155, %s156
      %p158 = scmp.eq.s32.totalorder %s157, 0
      %s160 = sadd.s32 %s159, 1
      %s161 = scalar_select %p158, %s159, %s160
      %p164 = pneg %p158
      %p165 = scmp.eq.s32.totalorder %s27, 1
      %p166 = por %p164, %p165
      %p167 = scmp.ne.s32.totalorder %s159, %s162
      %p168 = scmp.eq.s32.totalorder %s27, 0
      %p169 = por %p167, %p168
      %p170 = scmp.ne.s32.totalorder %s159, %s162
      %p171 = scmp.eq.s32.totalorder %s32, 1
      %p172 = por %p170, %p171
      %p173 = scmp.ne.s32.totalorder %s162, %s163
      %p174 = scmp.eq.s32.totalorder %s32, 0
      %p175 = por %p173, %p174
      %p176 = scmp.ne.s32.totalorder %s162, %s163
      %p177 = scmp.eq.s32.totalorder %s33, 1
      %p178 = por %p176, %p177
      %p180 = scmp.ne.s32.totalorder %s163, %s179
      %p181 = scmp.eq.s32.totalorder %s33, 0
      %p182 = por %p180, %p181
      %s183 = ssub.s32 %s34, %s46
      %s184 = ssub.s32 %s35, %s42
      %s185 = sor.u32 %s183, %s184
      %p186 = scmp.eq.s32.totalorder %s185, 0
      %s188 = sadd.s32 %s187, 1
      %s189 = scalar_select %p186, %s187, %s188
      %p192 = pneg %p186
      %p193 = scmp.eq.s32.totalorder %s27, 1
      %p194 = por %p192, %p193
      %p195 = scmp.ne.s32.totalorder %s187, %s190
      %p196 = scmp.eq.s32.totalorder %s27, 0
      %p197 = por %p195, %p196
      %p198 = scmp.ne.s32.totalorder %s187, %s190
      %p199 = scmp.eq.s32.totalorder %s32, 1
      %p200 = por %p198, %p199
      %p201 = scmp.ne.s32.totalorder %s190, %s191
      %p202 = scmp.eq.s32.totalorder %s32, 0
      %p203 = por %p201, %p202
      %p204 = scmp.ne.s32.totalorder %s190, %s191
      %p205 = scmp.eq.s32.totalorder %s33, 1
      %p206 = por %p204, %p205
      %p208 = scmp.ne.s32.totalorder %s191, %s207
      %p209 = scmp.eq.s32.totalorder %s33, 0
      %p210 = por %p208, %p209
      %p211 = scmp.le.s32.totalorder 1, %s27
      %p212 = scmp.lt.s32.totalorder %s27, 3
      %p213 = pnand %p211, %p212
      %p214 = pneg %p213
      // Predicated region
      $region9: #{tpu_custom_call.1} parent=5 // pred_check
        _
      $region10: #{tpu_custom_call.1} parent=5 // pred_check_branch
        %216 = sbr.rel (%p213) target = $region12
      $region11: #{tpu_custom_call.1} parent=5 // pred_region
        %s217 = ssub.s32 %s27, 1
      $region12: #{tpu_custom_call.1} parent=5 // pred_fallthru
        _
      %p218 = scmp.lt.s32.totalorder %s27, 2
      // Predicated region
      $region13: #{tpu_custom_call.1} parent=5 // pred_check
        %p219 = pneg %p218
      $region14: #{tpu_custom_call.1} parent=5 // pred_check_branch
        %221 = sbr.rel (%p219) target = $region16
      $region15: #{tpu_custom_call.1} parent=5 // pred_region
        // Predicated region
        $region17: #{tpu_custom_call.1} parent=15 // pred_check
          %p222 = pneg %p61
        $region18: #{tpu_custom_call.1} parent=15 // pred_check_branch
          %224 = sbr.rel (%p222) target = $region20
        $region19: #{tpu_custom_call.1} parent=15 // pred_region
          %s225 = sand.u32 %s51, 1
          %s226 = scalar_lea.sflag [#allocation3], %s225
          %s227 = sand.u32 %s51, 1
          %s228 = smul.addr %s227, 32
          %s229 = scalar_lea.vmem [#allocation2], %s228
          %s230 = smul.u32 4, %s34
          %232 = vsyncadd %s226, 0
          %s233 = sadd.s32 %s35, %s230
          %s234 = smul.addr %s233, 8
          %s235 = scalar_lea.hbm %s0, %s234
          %s236 = sshll.u32 %s235, 4
          %s237 = int_to_ptr.hbm [resolvable:$true] %s236
          %s238 = sshll.u32 %s229, 4
          %s239 = int_to_ptr.vmem [resolvable:$true] %s238
          %244 = dma.hbm_to_vmem [thread:$0]  %s237, 512, %s239, %s226, 128, 128, 8
        $region20: #{tpu_custom_call.1} parent=15 // pred_fallthru
          _
        // Predicated region
        $region21: #{tpu_custom_call.1} parent=15 // pred_check
          %p245 = pneg %p87
        $region22: #{tpu_custom_call.1} parent=15 // pred_check_branch
          %247 = sbr.rel (%p245) target = $region24
        $region23: #{tpu_custom_call.1} parent=15 // pred_region
          %s248 = sand.u32 %s27, 1
          %s249 = scalar_lea.sflag [#allocation6], %s248
          %s250 = sand.u32 %s77, 1
          %s251 = smul.addr %s250, 32
          %s252 = scalar_lea.vmem [#allocation5], %s251
          %s253 = smul.u32 4, %s34
          %255 = vsyncadd %s249, 0
          %s256 = smul.addr %s253, 8
          %s257 = scalar_lea.hbm %s1, %s256
          %s258 = sshll.u32 %s257, 4
          %s259 = int_to_ptr.hbm [resolvable:$true] %s258
          %s260 = sshll.u32 %s252, 4
          %s261 = int_to_ptr.vmem [resolvable:$true] %s260
          %266 = dma.hbm_to_vmem [thread:$0]  %s259, 512, %s261, %s249, 128, 128, 8
        $region24: #{tpu_custom_call.1} parent=15 // pred_fallthru
          _
        // Predicated region
        $region25: #{tpu_custom_call.1} parent=15 // pred_check
          %p267 = pneg %p113
        $region26: #{tpu_custom_call.1} parent=15 // pred_check_branch
          %269 = sbr.rel (%p267) target = $region28
        $region27: #{tpu_custom_call.1} parent=15 // pred_region
          %s270 = sand.u32 %s27, 1
          %s271 = scalar_lea.sflag [#allocation6], %s270
          %s272 = sand.u32 %s103, 1
          %s273 = smul.addr %s272, 32
          %s274 = scalar_lea.vmem [#allocation7], %s273
          %s275 = smul.u32 4, %s34
          %277 = vsyncadd %s271, 0
          %s278 = smul.addr %s275, 8
          %s279 = scalar_lea.hbm %s2, %s278
          %s280 = sshll.u32 %s279, 4
          %s281 = int_to_ptr.hbm [resolvable:$true] %s280
          %s282 = sshll.u32 %s274, 4
          %s283 = int_to_ptr.vmem [resolvable:$true] %s282
          %288 = dma.hbm_to_vmem [thread:$0]  %s281, 512, %s283, %s271, 128, 128, 8
        $region28: #{tpu_custom_call.1} parent=15 // pred_fallthru
          _
        // Predicated region
        $region29: #{tpu_custom_call.1} parent=15 // pred_check
          %p289 = pneg %p141
        $region30: #{tpu_custom_call.1} parent=15 // pred_check_branch
          %291 = sbr.rel (%p289) target = $region32
        $region31: #{tpu_custom_call.1} parent=15 // pred_region
          %s292 = sand.u32 %s131, 1
          %s293 = scalar_lea.sflag [#allocation9], %s292
          %s294 = sand.u32 %s131, 1
          %s295 = smul.addr %s294, 8
          %s296 = scalar_lea.vmem [#allocation8], %s295
          %s297 = smul.u32 4, %s34
          %299 = vsyncadd %s293, 0
          %s300 = sadd.s32 %s35, %s297
          %s301 = smul.addr %s300, 2
          %s302 = scalar_lea.hbm %s3, %s301
          %s303 = sshll.u32 %s302, 4
          %s304 = int_to_ptr.hbm [resolvable:$true] %s303
          %s305 = sshll.u32 %s296, 4
          %s306 = int_to_ptr.vmem [resolvable:$true] %s305
          %311 = dma.hbm_to_vmem [thread:$0]  %s304, 128, %s306, %s293, 32, 32, 2
        $region32: #{tpu_custom_call.1} parent=15 // pred_fallthru
          _
      $region16: #{tpu_custom_call.1} parent=5 // pred_fallthru
        _
      %p312 = scmp.le.s32.totalorder 1, %s27
      %p313 = scmp.lt.s32.totalorder %s27, 3
      %p314 = pnand %p312, %p313
      %p315 = pneg %p314
      // Predicated region
      $region33: #{tpu_custom_call.1} parent=5 // pred_check
        _
      $region34: #{tpu_custom_call.1} parent=5 // pred_check_branch
        %317 = sbr.rel (%p314) target = $region36
      $region35: #{tpu_custom_call.1} parent=5 // pred_region
        %s318 = ssub.s32 %s27, 1
        %s319 = sand.u32 %s54, 1
        %s320 = scalar_lea.sflag [#allocation3], %s319
        %s321 = sand.u32 %s54, 1
        %s322 = smul.addr %s321, 32
        %s323 = scalar_lea.vmem [#allocation2], %s322
        // Predicated region
        $region37: #{tpu_custom_call.1} parent=35 // pred_check
          %p324 = pneg %p67
        $region38: #{tpu_custom_call.1} parent=35 // pred_check_branch
          %326 = sbr.rel (%p324) target = $region40
        $region39: #{tpu_custom_call.1} parent=35 // pred_region
          %328 = dma.done %s320, 512
        $region40: #{tpu_custom_call.1} parent=35 // pred_fallthru
          _
        %s329 = sand.u32 %s32, 1
        %s330 = scalar_lea.sflag [#allocation6], %s329
        %s331 = sand.u32 %s80, 1
        %s332 = smul.addr %s331, 32
        %s333 = scalar_lea.vmem [#allocation5], %s332
        // Predicated region
        $region41: #{tpu_custom_call.1} parent=35 // pred_check
          %p334 = pneg %p93
        $region42: #{tpu_custom_call.1} parent=35 // pred_check_branch
          %336 = sbr.rel (%p334) target = $region44
        $region43: #{tpu_custom_call.1} parent=35 // pred_region
          %338 = dma.done %s330, 512
        $region44: #{tpu_custom_call.1} parent=35 // pred_fallthru
          _
        %s339 = sand.u32 %s32, 1
        %s340 = scalar_lea.sflag [#allocation6], %s339
        %s341 = sand.u32 %s106, 1
        %s342 = smul.addr %s341, 32
        %s343 = scalar_lea.vmem [#allocation7], %s342
        // Predicated region
        $region45: #{tpu_custom_call.1} parent=35 // pred_check
          %p344 = pneg %p119
        $region46: #{tpu_custom_call.1} parent=35 // pred_check_branch
          %346 = sbr.rel (%p344) target = $region48
        $region47: #{tpu_custom_call.1} parent=35 // pred_region
          %348 = dma.done %s340, 512
        $region48: #{tpu_custom_call.1} parent=35 // pred_fallthru
          _
        %s349 = sand.u32 %s134, 1
        %s350 = scalar_lea.sflag [#allocation9], %s349
        %s351 = sand.u32 %s134, 1
        %s352 = smul.addr %s351, 8
        %s353 = scalar_lea.vmem [#allocation8], %s352
        // Predicated region
        $region49: #{tpu_custom_call.1} parent=35 // pred_check
          %p354 = pneg %p147
        $region50: #{tpu_custom_call.1} parent=35 // pred_check_branch
          %356 = sbr.rel (%p354) target = $region52
        $region51: #{tpu_custom_call.1} parent=35 // pred_region
          %358 = dma.done %s350, 128
        $region52: #{tpu_custom_call.1} parent=35 // pred_fallthru
          _
        %s359 = sand.u32 %s54, 1
        %s360 = scalar_lea.sflag [#allocation3], %s359
        %s361 = sand.u32 %s54, 1
        %s362 = smul.addr %s361, 32
        %s363 = scalar_lea.vmem [#allocation2], %s362
        %p364 = pneg %p67
        %p365 = pneg %p64
        %s366 = sand.u32 %s32, 1
        %s367 = scalar_lea.sflag [#allocation6], %s366
        %s368 = sand.u32 %s80, 1
        %s369 = smul.addr %s368, 32
        %s370 = scalar_lea.vmem [#allocation5], %s369
        %p371 = pneg %p93
        %p372 = pneg %p90
        %s373 = sand.u32 %s32, 1
        %s374 = scalar_lea.sflag [#allocation6], %s373
        %s375 = sand.u32 %s106, 1
        %s376 = smul.addr %s375, 32
        %s377 = scalar_lea.vmem [#allocation7], %s376
        %p378 = pneg %p119
        %p379 = pneg %p116
        %s380 = sand.u32 %s134, 1
        %s381 = scalar_lea.sflag [#allocation9], %s380
        %s382 = sand.u32 %s134, 1
        %s383 = smul.addr %s382, 8
        %s384 = scalar_lea.vmem [#allocation8], %s383
        %p385 = pneg %p147
        %p386 = pneg %p144
        %p387 = pneg %p175
        %p388 = pneg %p172
        %s389 = sand.u32 %s162, 1
        %s390 = scalar_lea.sflag [#allocation4], %s389
        %s391 = sand.u32 %s162, 1
        %s392 = smul.addr %s391, 32
        %s393 = scalar_lea.vmem [#allocation10], %s392
        %p394 = pneg %p203
        %p395 = pneg %p200
        %s396 = sand.u32 %s190, 1
        %s397 = scalar_lea.sflag [#allocation12], %s396
        %s398 = sand.u32 %s190, 1
        %s399 = smul.addr %s398, 32
        %s400 = scalar_lea.vmem [#allocation11], %s399
        %s401 = smul.u32 4, %s36
        %s402 = smul.u32 4, %s36
        %s403 = smul.u32 4, %s36
        %s404 = smul.u32 4, %s36
        %s405 = smul.u32 4, %s36
        %s406 = smul.u32 4, %s36
        %v409 = vld [vmem:[%s323] sm:$0xff]
        %v410 = vld [vmem:[%s323 + $0x8] sm:$0xff]
        %v411 = vld [vmem:[%s323 + $0x10] sm:$0xff]
        %v412 = vld [vmem:[%s323 + $0x18] sm:$0xff]
        %v413 = vmul.f32 %v409, 0.17677669
        %v414 = vmul.f32 %v410, 0.17677669
        %v415 = vmul.f32 %v411, 0.17677669
        %v416 = vmul.f32 %v412, 0.17677669
        %v417 = vld [vmem:[%s333] sm:$0xff]
        %v418 = vld [vmem:[%s333 + $0x8] sm:$0xff]
        %v419 = vld [vmem:[%s333 + $0x10] sm:$0xff]
        %v420 = vld [vmem:[%s333 + $0x18] sm:$0xff]
        %vm421 = vcmask 261120
        %v423 = vsel %vm421, %v413, 0
        %v426 = vsel %vm421, %v417, 0
        %428 = vmatpush.xpose.msra.mxu0 0.0
        %429 = vmatpush.xpose.msra.mxu0 0.0
        %430 = vmatpush.xpose.msra.mxu0 0.0
        %431 = vmatpush.xpose.msra.mxu0 0.0
        %432 = vmatpush.xpose.msra.mxu0 0.0
        %433 = vmatpush.xpose.msra.mxu0 0.0
        %434 = vmatpush.xpose.msra.mxu0 0.0
        %435 = vmatpush.xpose.msra.mxu0 0.0
        %436 = vmatpush.xpose.msra.mxu0 0.0
        %437 = vmatpush.xpose.msra.mxu0 0.0
        %438 = vmatpush.xpose.msra.mxu0 0.0
        %439 = vmatpush.xpose.msra.mxu0 0.0
        %440 = vmatpush.xpose.msra.mxu0 0.0
        %441 = vmatpush.xpose.msra.mxu0 0.0
        %442 = vmatpush.xpose.msra.mxu0 0.0
        %443 = vmatpush.xpose.msra.mxu0 %v426
        %444 = vmatmul.f32.gmra.mxu0 %v423
        %v445 = vpop.f32.mrf.mxu0
        %v446 = vadd.f32 0.0, %v445
        %447 = vdwg.mxu0
        %v449 = vsel %vm421, %v414, 0
        %v452 = vsel %vm421, %v418, 0
        %454 = vmatpush.xpose.msra.mxu0 0.0
        %455 = vmatpush.xpose.msra.mxu0 0.0
        %456 = vmatpush.xpose.msra.mxu0 0.0
        %457 = vmatpush.xpose.msra.mxu0 0.0
        %458 = vmatpush.xpose.msra.mxu0 0.0
        %459 = vmatpush.xpose.msra.mxu0 0.0
        %460 = vmatpush.xpose.msra.mxu0 0.0
        %461 = vmatpush.xpose.msra.mxu0 0.0
        %462 = vmatpush.xpose.msra.mxu0 0.0
        %463 = vmatpush.xpose.msra.mxu0 0.0
        %464 = vmatpush.xpose.msra.mxu0 0.0
        %465 = vmatpush.xpose.msra.mxu0 0.0
        %466 = vmatpush.xpose.msra.mxu0 0.0
        %467 = vmatpush.xpose.msra.mxu0 0.0
        %468 = vmatpush.xpose.msra.mxu0 0.0
        %469 = vmatpush.xpose.msra.mxu0 %v452
        %470 = vmatmul.f32.gmra.mxu0 %v449
        %v471 = vpop.f32.mrf.mxu0
        %v472 = vadd.f32 0.0, %v471
        %473 = vdwg.mxu0
        %v475 = vsel %vm421, %v415, 0
        %v478 = vsel %vm421, %v419, 0
        %480 = vmatpush.xpose.msra.mxu0 0.0
        %481 = vmatpush.xpose.msra.mxu0 0.0
        %482 = vmatpush.xpose.msra.mxu0 0.0
        %483 = vmatpush.xpose.msra.mxu0 0.0
        %484 = vmatpush.xpose.msra.mxu0 0.0
        %485 = vmatpush.xpose.msra.mxu0 0.0
        %486 = vmatpush.xpose.msra.mxu0 0.0
        %487 = vmatpush.xpose.msra.mxu0 0.0
        %488 = vmatpush.xpose.msra.mxu0 0.0
        %489 = vmatpush.xpose.msra.mxu0 0.0
        %490 = vmatpush.xpose.msra.mxu0 0.0
        %491 = vmatpush.xpose.msra.mxu0 0.0
        %492 = vmatpush.xpose.msra.mxu0 0.0
        %493 = vmatpush.xpose.msra.mxu0 0.0
        %494 = vmatpush.xpose.msra.mxu0 0.0
        %495 = vmatpush.xpose.msra.mxu0 %v478
        %496 = vmatmul.f32.gmra.mxu0 %v475
        %v497 = vpop.f32.mrf.mxu0
        %v498 = vadd.f32 0.0, %v497
        %499 = vdwg.mxu0
        %v501 = vsel %vm421, %v416, 0
        %v504 = vsel %vm421, %v420, 0
        %506 = vmatpush.xpose.msra.mxu0 0.0
        %507 = vmatpush.xpose.msra.mxu0 0.0
        %508 = vmatpush.xpose.msra.mxu0 0.0
        %509 = vmatpush.xpose.msra.mxu0 0.0
        %510 = vmatpush.xpose.msra.mxu0 0.0
        %511 = vmatpush.xpose.msra.mxu0 0.0
        %512 = vmatpush.xpose.msra.mxu0 0.0
        %513 = vmatpush.xpose.msra.mxu0 0.0
        %514 = vmatpush.xpose.msra.mxu0 0.0
        %515 = vmatpush.xpose.msra.mxu0 0.0
        %516 = vmatpush.xpose.msra.mxu0 0.0
        %517 = vmatpush.xpose.msra.mxu0 0.0
        %518 = vmatpush.xpose.msra.mxu0 0.0
        %519 = vmatpush.xpose.msra.mxu0 0.0
        %520 = vmatpush.xpose.msra.mxu0 0.0
        %521 = vmatpush.xpose.msra.mxu0 %v504
        %522 = vmatmul.f32.gmra.mxu0 %v501
        %v523 = vpop.f32.mrf.mxu0
        %v524 = vadd.f32 0.0, %v523
        %525 = vdwg.mxu0
        %v526 = vld [vmem:[%s353] sm:$0x3]
        %v527 = vld [vmem:[%s353 + $0x2] sm:$0x3]
        %v528 = vld [vmem:[%s353 + $0x4] sm:$0x3]
        %v529 = vld [vmem:[%s353 + $0x6] sm:$0x3]
        %vm530 = vnez %v526
        %vm531 = vnez %v527
        %vm532 = vnez %v528
        %vm533 = vnez %v529
        %v534 = vsel %vm530, 16843009, 0
        %v535 = vsel %vm531, 16843009, 0
        %v536 = vsel %vm532, 16843009, 0
        %v537 = vsel %vm533, 16843009, 0
        %v538 = vunpack.c.0.s8 %v534
        %v539 = vunpack.c.0.s8 %v535
        %v540 = vunpack.c.0.s8 %v536
        %v541 = vunpack.c.0.s8 %v537
        %vm542 = vcmp.ne.s32.totalorder %v538, 0
        %vm543 = vcmp.ne.s32.totalorder %v539, 0
        %vm544 = vcmp.ne.s32.totalorder %v540, 0
        %vm545 = vcmp.ne.s32.totalorder %v541, 0
        %v546 = vsel %vm542, -1e+10, %v446
        %v547 = vsel %vm543, -1e+10, %v472
        %v548 = vsel %vm544, -1e+10, %v498
        %v549 = vsel %vm545, -1e+10, %v524
        %vm550 = vcmask 64512
        %v551 = vsel %vm550, %v546, -inf
        %552 = vmax.xlane.f32.xlu0 %v551
        %v553 = vpop.xlane.xlu0 %552
        %v554 = vsel %vm550, %v547, -inf
        %555 = vmax.xlane.f32.xlu0 %v554
        %v556 = vpop.xlane.xlu0 %555
        %v557 = vsel %vm550, %v548, -inf
        %558 = vmax.xlane.f32.xlu0 %v557
        %v559 = vpop.xlane.xlu0 %558
        %v560 = vsel %vm550, %v549, -inf
        %561 = vmax.xlane.f32.xlu0 %v560
        %v562 = vpop.xlane.xlu0 %561
        %v563 = vsub.f32 %v546, %v553
        %v564 = vsub.f32 %v547, %v556
        %v565 = vsub.f32 %v548, %v559
        %v566 = vsub.f32 %v549, %v562
        %v567 = vmul.f32 %v563, 1.442695
        %v568 = vpow.pop %v567
        %v569 = vmul.f32 %v564, 1.442695
        %v570 = vpow.pop %v569
        %v571 = vmul.f32 %v565, 1.442695
        %v572 = vpow.pop %v571
        %v573 = vmul.f32 %v566, 1.442695
        %v574 = vpow.pop %v573
        %v575 = vsel %vm550, %v568, 0.0
        %576 = vadd.xlane.f32.xlu0 %v575
        %v577 = vpop.xlane.xlu0 %576
        %v578 = vsel %vm550, %v570, 0.0
        %579 = vadd.xlane.f32.xlu0 %v578
        %v580 = vpop.xlane.xlu0 %579
        %v581 = vsel %vm550, %v572, 0.0
        %582 = vadd.xlane.f32.xlu0 %v581
        %v583 = vpop.xlane.xlu0 %582
        %v584 = vsel %vm550, %v574, 0.0
        %585 = vadd.xlane.f32.xlu0 %v584
        %v586 = vpop.xlane.xlu0 %585
        %v587 = vrcp.pop %v577
        %v588 = vmul.f32 %v577, %v587
        %v589 = vsub.f32 1.0, %v588
        %v590 = vmul.f32 %v587, %v589
        %v591 = vadd.f32 %v587, %v590
        %vm592 = vweird.f32 %v577
        %vm593 = vweird.f32 %v587
        %vm594 = vmor %vm592, %vm593
        %v595 = vsel %vm594, %v587, %v591
        %v596 = vand.u32 2147483647, %v577
        %vm597 = vcmp.eq.f32.partialorder %v596, 8.507059e+37
        %v598 = vand.u32 %v577, 2147483648
        %v599 = vor.u32 1.1754944e-38, %v598
        %v600 = vsel %vm597, %v599, %v595
        %v601 = vrcp.pop %v580
        %v602 = vmul.f32 %v580, %v601
        %v603 = vsub.f32 1.0, %v602
        %v604 = vmul.f32 %v601, %v603
        %v605 = vadd.f32 %v601, %v604
        %vm606 = vweird.f32 %v580
        %vm607 = vweird.f32 %v601
        %vm608 = vmor %vm606, %vm607
        %v609 = vsel %vm608, %v601, %v605
        %v610 = vand.u32 2147483647, %v580
        %vm611 = vcmp.eq.f32.partialorder %v610, 8.507059e+37
        %v612 = vand.u32 %v580, 2147483648
        %v613 = vor.u32 1.1754944e-38, %v612
        %v614 = vsel %vm611, %v613, %v609
        %v615 = vrcp.pop %v583
        %v616 = vmul.f32 %v583, %v615
        %v617 = vsub.f32 1.0, %v616
        %v618 = vmul.f32 %v615, %v617
        %v619 = vadd.f32 %v615, %v618
        %vm620 = vweird.f32 %v583
        %vm621 = vweird.f32 %v615
        %vm622 = vmor %vm620, %vm621
        %v623 = vsel %vm622, %v615, %v619
        %v624 = vand.u32 2147483647, %v583
        %vm625 = vcmp.eq.f32.partialorder %v624, 8.507059e+37
        %v626 = vand.u32 %v583, 2147483648
        %v627 = vor.u32 1.1754944e-38, %v626
        %v628 = vsel %vm625, %v627, %v623
        %v629 = vrcp.pop %v586
        %v630 = vmul.f32 %v586, %v629
        %v631 = vsub.f32 1.0, %v630
        %v632 = vmul.f32 %v629, %v631
        %v633 = vadd.f32 %v629, %v632
        %vm634 = vweird.f32 %v586
        %vm635 = vweird.f32 %v629
        %vm636 = vmor %vm634, %vm635
        %v637 = vsel %vm636, %v629, %v633
        %v638 = vand.u32 2147483647, %v586
        %vm639 = vcmp.eq.f32.partialorder %v638, 8.507059e+37
        %v640 = vand.u32 %v586, 2147483648
        %v641 = vor.u32 1.1754944e-38, %v640
        %v642 = vsel %vm639, %v641, %v637
        %v643 = vmul.f32 %v568, %v600
        %v644 = vmul.f32 %v570, %v614
        %v645 = vmul.f32 %v572, %v628
        %v646 = vmul.f32 %v574, %v642
        %647 = vst.msk [vmem:[%s400] sm:$0xff] %vm550, %v643
        %648 = vst.msk [vmem:[%s400 + $0x8] sm:$0xff] %vm550, %v644
        %649 = vst.msk [vmem:[%s400 + $0x10] sm:$0xff] %vm550, %v645
        %650 = vst.msk [vmem:[%s400 + $0x18] sm:$0xff] %vm550, %v646
        %v651 = vld [vmem:[%s343] sm:$0xff]
        %v652 = vld [vmem:[%s343 + $0x8] sm:$0xff]
        %v653 = vld [vmem:[%s343 + $0x10] sm:$0xff]
        %v654 = vld [vmem:[%s343 + $0x18] sm:$0xff]
        %v656 = vsel %vm550, %v643, 0
        %658 = vmatpush.msra.mxu0 0.0
        %659 = vmatpush.msra.mxu0 0.0
        %660 = vmatpush.msra.mxu0 0.0
        %661 = vmatpush.msra.mxu0 0.0
        %662 = vmatpush.msra.mxu0 0.0
        %663 = vmatpush.msra.mxu0 0.0
        %664 = vmatpush.msra.mxu0 0.0
        %665 = vmatpush.msra.mxu0 0.0
        %666 = vmatpush.msra.mxu0 0.0
        %667 = vmatpush.msra.mxu0 0.0
        %668 = vmatpush.msra.mxu0 0.0
        %669 = vmatpush.msra.mxu0 0.0
        %670 = vmatpush.msra.mxu0 0.0
        %671 = vmatpush.msra.mxu0 0.0
        %672 = vmatpush.msra.mxu0 0.0
        %673 = vmatpush.msra.mxu0 %v651
        %674 = vmatmul.f32.gmra.mxu0 %v656
        %v675 = vpop.f32.mrf.mxu0
        %v676 = vadd.f32 0.0, %v675
        %677 = vdwg.mxu0
        %v679 = vsel %vm550, %v644, 0
        %681 = vmatpush.msra.mxu0 0.0
        %682 = vmatpush.msra.mxu0 0.0
        %683 = vmatpush.msra.mxu0 0.0
        %684 = vmatpush.msra.mxu0 0.0
        %685 = vmatpush.msra.mxu0 0.0
        %686 = vmatpush.msra.mxu0 0.0
        %687 = vmatpush.msra.mxu0 0.0
        %688 = vmatpush.msra.mxu0 0.0
        %689 = vmatpush.msra.mxu0 0.0
        %690 = vmatpush.msra.mxu0 0.0
        %691 = vmatpush.msra.mxu0 0.0
        %692 = vmatpush.msra.mxu0 0.0
        %693 = vmatpush.msra.mxu0 0.0
        %694 = vmatpush.msra.mxu0 0.0
        %695 = vmatpush.msra.mxu0 0.0
        %696 = vmatpush.msra.mxu0 %v652
        %697 = vmatmul.f32.gmra.mxu0 %v679
        %v698 = vpop.f32.mrf.mxu0
        %v699 = vadd.f32 0.0, %v698
        %700 = vdwg.mxu0
        %v702 = vsel %vm550, %v645, 0
        %704 = vmatpush.msra.mxu0 0.0
        %705 = vmatpush.msra.mxu0 0.0
        %706 = vmatpush.msra.mxu0 0.0
        %707 = vmatpush.msra.mxu0 0.0
        %708 = vmatpush.msra.mxu0 0.0
        %709 = vmatpush.msra.mxu0 0.0
        %710 = vmatpush.msra.mxu0 0.0
        %711 = vmatpush.msra.mxu0 0.0
        %712 = vmatpush.msra.mxu0 0.0
        %713 = vmatpush.msra.mxu0 0.0
        %714 = vmatpush.msra.mxu0 0.0
        %715 = vmatpush.msra.mxu0 0.0
        %716 = vmatpush.msra.mxu0 0.0
        %717 = vmatpush.msra.mxu0 0.0
        %718 = vmatpush.msra.mxu0 0.0
        %719 = vmatpush.msra.mxu0 %v653
        %720 = vmatmul.f32.gmra.mxu0 %v702
        %v721 = vpop.f32.mrf.mxu0
        %v722 = vadd.f32 0.0, %v721
        %723 = vdwg.mxu0
        %v725 = vsel %vm550, %v646, 0
        %727 = vmatpush.msra.mxu0 0.0
        %728 = vmatpush.msra.mxu0 0.0
        %729 = vmatpush.msra.mxu0 0.0
        %730 = vmatpush.msra.mxu0 0.0
        %731 = vmatpush.msra.mxu0 0.0
        %732 = vmatpush.msra.mxu0 0.0
        %733 = vmatpush.msra.mxu0 0.0
        %734 = vmatpush.msra.mxu0 0.0
        %735 = vmatpush.msra.mxu0 0.0
        %736 = vmatpush.msra.mxu0 0.0
        %737 = vmatpush.msra.mxu0 0.0
        %738 = vmatpush.msra.mxu0 0.0
        %739 = vmatpush.msra.mxu0 0.0
        %740 = vmatpush.msra.mxu0 0.0
        %741 = vmatpush.msra.mxu0 0.0
        %742 = vmatpush.msra.mxu0 %v654
        %743 = vmatmul.f32.gmra.mxu0 %v725
        %v744 = vpop.f32.mrf.mxu0
        %v745 = vadd.f32 0.0, %v744
        %746 = vdwg.mxu0
        %747 = vst.msk [vmem:[%s393] sm:$0xff] %vm421, %v676
        %748 = vst.msk [vmem:[%s393 + $0x8] sm:$0xff] %vm421, %v699
        %749 = vst.msk [vmem:[%s393 + $0x10] sm:$0xff] %vm421, %v722
        %750 = vst.msk [vmem:[%s393 + $0x18] sm:$0xff] %vm421, %v745
        %s751 = sand.u32 %s162, 1
        %s752 = scalar_lea.sflag [#allocation4], %s751
        %s753 = sand.u32 %s162, 1
        %s754 = smul.addr %s753, 32
        %s755 = scalar_lea.vmem [#allocation10], %s754
        %s756 = sand.u32 %s190, 1
        %s757 = scalar_lea.sflag [#allocation12], %s756
        %s758 = sand.u32 %s190, 1
        %s759 = smul.addr %s758, 32
        %s760 = scalar_lea.vmem [#allocation11], %s759
        // Predicated region
        $region53: #{tpu_custom_call.1} parent=35 // pred_check
          %p761 = pneg %p172
        $region54: #{tpu_custom_call.1} parent=35 // pred_check_branch
          %763 = sbr.rel (%p761) target = $region56
        $region55: #{tpu_custom_call.1} parent=35 // pred_region
          %s764 = smul.u32 4, %s36
          %766 = vsyncadd %s752, 0
          %s767 = sadd.s32 %s37, %s764
          %s768 = smul.addr %s767, 8
          %s769 = scalar_lea.hbm %s4, %s768
          %s770 = sshll.u32 %s755, 4
          %s771 = int_to_ptr.vmem [resolvable:$true] %s770
          %s772 = sshll.u32 %s769, 4
          %s773 = int_to_ptr.hbm [resolvable:$true] %s772
          %778 = dma.vmem_to_hbm [thread:$0]  %s771, 512, %s773, %s752, 128, 128, 8
        $region56: #{tpu_custom_call.1} parent=35 // pred_fallthru
          _
        // Predicated region
        $region57: #{tpu_custom_call.1} parent=35 // pred_check
          %p779 = pneg %p200
        $region58: #{tpu_custom_call.1} parent=35 // pred_check_branch
          %781 = sbr.rel (%p779) target = $region60
        $region59: #{tpu_custom_call.1} parent=35 // pred_region
          %s782 = smul.u32 4, %s36
          %784 = vsyncadd %s757, 0
          %s785 = sadd.s32 %s37, %s782
          %s786 = smul.addr %s785, 8
          %s787 = scalar_lea.hbm %s5, %s786
          %s788 = sshll.u32 %s760, 4
          %s789 = int_to_ptr.vmem [resolvable:$true] %s788
          %s790 = sshll.u32 %s787, 4
          %s791 = int_to_ptr.hbm [resolvable:$true] %s790
          %796 = dma.vmem_to_hbm [thread:$0]  %s789, 512, %s791, %s757, 128, 128, 8
        $region60: #{tpu_custom_call.1} parent=35 // pred_fallthru
          _
      $region36: #{tpu_custom_call.1} parent=5 // pred_fallthru
        _
      %p797 = scmp.le.s32.totalorder 2, %s27
      // Predicated region
      $region61: #{tpu_custom_call.1} parent=5 // pred_check
        %p798 = pneg %p797
      $region62: #{tpu_custom_call.1} parent=5 // pred_check_branch
        %800 = sbr.rel (%p798) target = $region64
      $region63: #{tpu_custom_call.1} parent=5 // pred_region
        %s801 = ssub.s32 %s27, 2
        // Predicated region
        $region65: #{tpu_custom_call.1} parent=63 // pred_check
          %p802 = pneg %p178
        $region66: #{tpu_custom_call.1} parent=63 // pred_check_branch
          %804 = sbr.rel (%p802) target = $region68
        $region67: #{tpu_custom_call.1} parent=63 // pred_region
          %s805 = sand.u32 %s163, 1
          %s806 = scalar_lea.sflag [#allocation4], %s805
          %s807 = sand.u32 %s163, 1
          %s808 = smul.addr %s807, 32
          %s809 = scalar_lea.vmem [#allocation10], %s808
          %811 = dma.done %s806, 512
        $region68: #{tpu_custom_call.1} parent=63 // pred_fallthru
          _
        // Predicated region
        $region69: #{tpu_custom_call.1} parent=63 // pred_check
          %p812 = pneg %p206
        $region70: #{tpu_custom_call.1} parent=63 // pred_check_branch
          %814 = sbr.rel (%p812) target = $region72
        $region71: #{tpu_custom_call.1} parent=63 // pred_region
          %s815 = sand.u32 %s191, 1
          %s816 = scalar_lea.sflag [#allocation12], %s815
          %s817 = sand.u32 %s191, 1
          %s818 = smul.addr %s817, 32
          %s819 = scalar_lea.vmem [#allocation11], %s818
          %821 = dma.done %s816, 512
        $region72: #{tpu_custom_call.1} parent=63 // pred_fallthru
          _
      $region64: #{tpu_custom_call.1} parent=5 // pred_fallthru
        _
    $region6: #{tpu_custom_call.1} parent=1 // loop_footer
      %s31 = sadd.s32 1, %s27
    $region7: #{tpu_custom_call.1} parent=1 // loop_footer_branch
      %26 = sbr.rel target = $region3
    $region8: #{tpu_custom_call.1} parent=1 // loop_exit
      _
    %822 = vsyncpa [#allocation3], 1
    %s823 = scalar_lea.sflag [#allocation3], 1
    %824 = vsyncpa %s823, 1
    %825 = vsyncpa [#allocation6], 1
    %s826 = scalar_lea.sflag [#allocation6], 1
    %827 = vsyncpa %s826, 1
    %828 = vsyncpa [#allocation9], 1
    %s829 = scalar_lea.sflag [#allocation9], 1
    %830 = vsyncpa %s829, 1
    %831 = vsyncpa [#allocation4], 1
    %s832 = scalar_lea.sflag [#allocation4], 1
    %833 = vsyncpa %s832, 1
    %834 = vsyncpa [#allocation12], 1
    %s835 = scalar_lea.sflag [#allocation12], 1
    %836 = vsyncpa %s835, 1

</llo_original>
